<compile_context>
chip_gen: v7x
topology: tpu7x:2x2x1
jax: 0.10.0
libtpu: 0.0.40
codegen_flags: <defaults>
</compile_context>

<pallas_src>
import jax
import jax.numpy as jnp
from jax.experimental import pallas as pl
from jax.experimental.pallas import tpu as pltpu


def _leaky_relu(v, slope=0.3):
    return jnp.where(v >= 0, v, slope * v)


def _sfc_kernel(n_ref, fb_ref, wabt_ref, x_ref, out_ref):
    # n_ref   : SMEM (1,) int32   -- true token count n (for masking the padded tail)
    # fb_ref  : SMEM (1,) float32 -- bias of the scoring Linear
    # wabt_ref: VMEM (2, dim)     -- folded weights: row 0 = wA @ W, row 1 = wB @ W
    # x_ref   : VMEM (3, TILE_N, dim) tile of x (views, tokens, features)
    # out_ref : VMEM (8, 128)     -- per-split partial sums; lanes 0..2 of row 0 hold
    #                                sum_t [c1, c2, c3] (pre-mean, pre-softmax)
    tile = x_ref.shape[1]
    split = pl.program_id(0)
    step = pl.program_id(1)
    n_steps = pl.num_programs(1)

    @pl.when(step == 0)
    def _init():
        out_ref[...] = jnp.zeros_like(out_ref)

    bias = fb_ref[0]
    n_tok = n_ref[0]
    wabt = wabt_ref[...]                       # (2, dim)

    # s_i = wabt @ x_i^T  -> (2, TILE_N); tokens on the lane axis (A·B^T contraction).
    dn = (((1,), (1,)), ((), ()))
    s0 = jax.lax.dot_general(wabt, x_ref[0], dn, preferred_element_type=jnp.float32)
    s1 = jax.lax.dot_general(wabt, x_ref[1], dn, preferred_element_type=jnp.float32)
    s2 = jax.lax.dot_general(wabt, x_ref[2], dn, preferred_element_type=jnp.float32)

    sA0, sB0 = s0[0:1, :], s0[1:2, :]          # (1, TILE_N)
    sA1, sB1 = s1[0:1, :], s1[1:2, :]
    sA2, sB2 = s2[0:1, :], s2[1:2, :]

    # Mask out padded tokens (padding contributes LeakyReLU(bias) != 0 otherwise).
    tok = (split * n_steps + step) * tile + jax.lax.broadcasted_iota(
        jnp.int32, (1, tile), 1)
    valid = tok < n_tok

    def pair_sum(sa, sb_j, sb_k):
        c = _leaky_relu(sa + sb_j + bias) + _leaky_relu(sa + sb_k + bias)
        c = jnp.where(valid, c, 0.0)
        return jnp.sum(c, axis=-1, keepdims=True)        # (1, 1)

    p1 = pair_sum(sA0, sB1, sB2)
    p2 = pair_sum(sA1, sB0, sB2)
    p3 = pair_sum(sA2, sB0, sB1)

    lane = jax.lax.broadcasted_iota(jnp.int32, (1, 128), 1)
    row = jnp.where(lane == 0, p1,
                    jnp.where(lane == 1, p2,
                              jnp.where(lane == 2, p3, 0.0)))  # (1, 128)
    out_ref[...] += jnp.broadcast_to(row, out_ref.shape)


def _round_up(a, m):
    return (a + m - 1) // m * m


def _semantic_fusion_coef_pallas(x, W_weight, f_weight, f_bias):
    """x: (3, n, dim) f32.  W_weight: (dim_fused, dim).  f_weight: (1, 2*dim_fused).  f_bias: (1,)."""
    b, n, dim = x.shape
    assert b == 3, "module indexes f[0], f[1], f[2] -> batch must be 3"
    dim_fused = W_weight.shape[0]

    # Fold the two linear maps: wabt[0] = wA @ W, wabt[1] = wB @ W  -> (2, dim).
    wabt = (f_weight.reshape(2, dim_fused).astype(jnp.float32)
            @ W_weight.astype(jnp.float32))

    # Tile size: lane-multiple, capped so the double-buffered x block stays small
    # (fits comfortably under v7x's 32 MiB default scoped VMEM).
    vmem_budget = 12 * 1024 * 1024
    cap = max(128, (vmem_budget // (2 * 3 * dim * 4)) // 128 * 128)
    tile = int(min(512, cap, _round_up(n, 128)))

    # Split n across 2 TensorCores on v7x ("parallel" axis); harmless on 1-TC chips.
    num_splits = 2 if pl.cdiv(n, tile) >= 2 else 1
    tiles_total = _round_up(pl.cdiv(n, tile), num_splits)
    tiles_per_split = tiles_total // num_splits
    n_pad = tiles_total * tile

    x_pad = jnp.pad(x.astype(jnp.float32), ((0, 0), (0, n_pad - n), (0, 0)))

    out = pl.pallas_call(
        _sfc_kernel,
        out_shape=jax.ShapeDtypeStruct((num_splits * 8, 128), jnp.float32),
        grid_spec=pltpu.PrefetchScalarGridSpec(
            num_scalar_prefetch=0,
            grid=(num_splits, tiles_per_split),
            in_specs=[
                pl.BlockSpec(memory_space=pltpu.MemorySpace.SMEM),   # n
                pl.BlockSpec(memory_space=pltpu.MemorySpace.SMEM),   # bias
                pl.BlockSpec(memory_space=pltpu.MemorySpace.VMEM),   # folded weights
                pl.BlockSpec((3, tile, dim),
                             lambda c, i: (0, c * tiles_per_split + i, 0)),
            ],
            out_specs=pl.BlockSpec((8, 128), lambda c, i: (c, 0)),
        ),
        compiler_params=pltpu.CompilerParams(
            dimension_semantics=("parallel", "arbitrary")),
    )(jnp.asarray([n], dtype=jnp.int32),
      f_bias.astype(jnp.float32),
      wabt,
      x_pad)

    # Combine the per-core partial sums, take the mean, softmax over the 3 views.
    partial = out.reshape(num_splits, 8, 128)[:, 0, :3].sum(axis=0)   # (3,)
    return jax.nn.softmax(partial / n)


def semantic_fusion_coef(x, W_weight, f_weight, f_bias, *, use_pallas=None):
    """Forward pass. For tiny n the standalone kernel is pure launch/DMA overhead,
    so by default fall back to plain XLA below a size threshold."""
    n = x.shape[1]
    if use_pallas is None:
        use_pallas = n >= 1024
    if not use_pallas:
        return _reference(x, W_weight, f_weight, f_bias)
    return _semantic_fusion_coef_pallas(x, W_weight, f_weight, f_bias)


def _reference(x, W_weight, f_weight, f_bias):
    # Pure-JAX re-implementation of the PyTorch forward, for verification / small-n path.
    f = jnp.einsum("bnd,ed->bne", x, W_weight)
    f1, f2, f3 = f[0], f[1], f[2]

    def score(a, b):
        cat = jnp.concatenate([a, b], axis=-1)
        return jax.nn.leaky_relu(cat @ f_weight[0] + f_bias[0], negative_slope=0.3)

    a1 = jnp.mean(score(f1, f2) + score(f1, f3))
    a2 = jnp.mean(score(f2, f1) + score(f2, f3))
    a3 = jnp.mean(score(f3, f1) + score(f3, f2))
    coef = jnp.stack([a1, a2, a3])
    return jax.nn.softmax(coef, axis=-1)


if __name__ == "__main__":
    key = jax.random.PRNGKey(0)

    def run_case(n, dim, dim_fused, case_key):
        k1, k2, k3, k4 = jax.random.split(case_key, 4)
        x = jax.random.normal(k1, (3, n, dim), dtype=jnp.float32)
        W_weight = 0.1 * jax.random.normal(k2, (dim_fused, dim), dtype=jnp.float32)   # W.weight
        f_weight = 0.1 * jax.random.normal(k3, (1, 2 * dim_fused), dtype=jnp.float32) # f.weight
        f_bias = 0.1 * jax.random.normal(k4, (1,), dtype=jnp.float32)                 # f.bias

        coef = jax.block_until_ready(
            semantic_fusion_coef(x, W_weight, f_weight, f_bias, use_pallas=True))
        ref = _reference(x, W_weight, f_weight, f_bias)
        assert coef.shape == (3,)
        assert jnp.allclose(coef, ref, atol=1e-4, rtol=1e-4), (n, dim, coef, ref)

    k_a, k_b = jax.random.split(key)
    # Small, module-consistent shape (single tile, heavy tail masking).
    run_case(n=8, dim=32, dim_fused=16, case_key=k_a)
    # Multi-tile shape: exercises the 2-way core split, multi-step accumulation and the
    # partially/fully masked remainder tiles.
    run_case(n=1500, dim=64, dim_fused=48, case_key=k_b)

    print("KERNEL_OK")
</pallas_src>

<mosaic_0001>
module attributes {stable_mosaic.version = 11 : i64} {
  func.func @_sfc_kernel(%arg0: i32, %arg1: i32, %arg2: memref<1xi32, #tpu.memory_space<smem>>, %arg3: memref<1xf32, #tpu.memory_space<smem>>, %arg4: memref<2x32xf32, #tpu.memory_space<vmem>>, %arg5: memref<3x128x32xf32, #tpu.memory_space<vmem>>, %arg6: memref<8x128xf32, #tpu.memory_space<vmem>>) attributes {dimension_semantics = [#tpu.dimension_semantics<parallel>, #tpu.dimension_semantics<arbitrary>], iteration_bounds = array<i64: 1, 1>, scalar_prefetch = 0 : i64, scratch_operands = 0 : i64, tpu.core_type = #tpu.core_type<tc>, window_params = [{transform_indices = @transform_0, window_bounds = array<i64: 1>}, {transform_indices = @transform_1, window_bounds = array<i64: 1>}, {pipeline_mode = #tpu.pipeline_mode<synchronous>, transform_indices = @transform_2, window_bounds = array<i64: 2, 32>}, {transform_indices = @transform_3, window_bounds = array<i64: 3, 128, 32>}, {transform_indices = @transform_4, window_bounds = array<i64: 8, 128>}]} {
    %c0_i32 = arith.constant 0 : i32
    %0 = arith.cmpi eq, %arg1, %c0_i32 : i32
    %1 = arith.extui %0 : i1 to i32
    %c0_i32_0 = arith.constant 0 : i32
    %2 = arith.cmpi ne, %1, %c0_i32_0 : i32
    scf.if %2 {
      %cst_38 = arith.constant 0.000000e+00 : f32
      %114 = vector.broadcast %cst_38 : f32 to vector<8x128xf32>
      %c0_39 = arith.constant 0 : index
      %c0_40 = arith.constant 0 : index
      %115 = vector.load %arg6[%c0_39, %c0_40] : memref<8x128xf32, #tpu.memory_space<vmem>>, vector<8x128xf32>
      tpu.vector_store %arg6[%c0_39, %c0_40], %114 {strides = array<i32>} : memref<8x128xf32, #tpu.memory_space<vmem>>, vector<8x128xf32>,
    } else {
    }
    %c0 = arith.constant 0 : index
    %3 = memref.load %arg3[%c0] : memref<1xf32, #tpu.memory_space<smem>>
    %c0_1 = arith.constant 0 : index
    %4 = memref.load %arg2[%c0_1] : memref<1xi32, #tpu.memory_space<smem>>
    %c0_2 = arith.constant 0 : index
    %c0_3 = arith.constant 0 : index
    %5 = vector.load %arg4[%c0_2, %c0_3] : memref<2x32xf32, #tpu.memory_space<vmem>>, vector<2x32xf32>
    %c0_4 = arith.constant 0 : index
    %c0_5 = arith.constant 0 : index
    %c0_6 = arith.constant 0 : index
    %6 = vector.load %arg5[%c0_4, %c0_5, %c0_6] : memref<3x128x32xf32, #tpu.memory_space<vmem>>, vector<1x128x32xf32>
    %7 = vector.shape_cast %6 : vector<1x128x32xf32> to vector<128x32xf32>
    %cst = arith.constant dense<0.000000e+00> : vector<2x128xf32>
    %8 = tpu.matmul %5, %7, %cst {dimension_numbers = #tpu.dot_dimension_numbers<[1], [1], [0], [0], [0, 0, 1, 0], [], []>} : vector<2x32xf32>, vector<128x32xf32>, vector<2x128xf32> -> vector<2x128xf32>
    %c1 = arith.constant 1 : index
    %c0_7 = arith.constant 0 : index
    %c0_8 = arith.constant 0 : index
    %9 = vector.load %arg5[%c1, %c0_7, %c0_8] : memref<3x128x32xf32, #tpu.memory_space<vmem>>, vector<1x128x32xf32>
    %10 = vector.shape_cast %9 : vector<1x128x32xf32> to vector<128x32xf32>
    %cst_9 = arith.constant dense<0.000000e+00> : vector<2x128xf32>
    %11 = tpu.matmul %5, %10, %cst_9 {dimension_numbers = #tpu.dot_dimension_numbers<[1], [1], [0], [0], [0, 0, 1, 0], [], []>} : vector<2x32xf32>, vector<128x32xf32>, vector<2x128xf32> -> vector<2x128xf32>
    %c2 = arith.constant 2 : index
    %c0_10 = arith.constant 0 : index
    %c0_11 = arith.constant 0 : index
    %12 = vector.load %arg5[%c2, %c0_10, %c0_11] : memref<3x128x32xf32, #tpu.memory_space<vmem>>, vector<1x128x32xf32>
    %13 = vector.shape_cast %12 : vector<1x128x32xf32> to vector<128x32xf32>
    %cst_12 = arith.constant dense<0.000000e+00> : vector<2x128xf32>
    %14 = tpu.matmul %5, %13, %cst_12 {dimension_numbers = #tpu.dot_dimension_numbers<[1], [1], [0], [0], [0, 0, 1, 0], [], []>} : vector<2x32xf32>, vector<128x32xf32>, vector<2x128xf32> -> vector<2x128xf32>
    %15 = vector.extract_strided_slice %8 {offsets = [0, 0], sizes = [1, 128], strides = [1, 1]} : vector<2x128xf32> to vector<1x128xf32>
    %16 = vector.extract_strided_slice %8 {offsets = [1, 0], sizes = [1, 128], strides = [1, 1]} : vector<2x128xf32> to vector<1x128xf32>
    %17 = vector.extract_strided_slice %11 {offsets = [0, 0], sizes = [1, 128], strides = [1, 1]} : vector<2x128xf32> to vector<1x128xf32>
    %18 = vector.extract_strided_slice %11 {offsets = [1, 0], sizes = [1, 128], strides = [1, 1]} : vector<2x128xf32> to vector<1x128xf32>
    %19 = vector.extract_strided_slice %14 {offsets = [0, 0], sizes = [1, 128], strides = [1, 1]} : vector<2x128xf32> to vector<1x128xf32>
    %20 = vector.extract_strided_slice %14 {offsets = [1, 0], sizes = [1, 128], strides = [1, 1]} : vector<2x128xf32> to vector<1x128xf32>
    %c1_i32 = arith.constant 1 : i32
    %21 = arith.muli %arg0, %c1_i32 : i32
    %22 = arith.addi %21, %arg1 : i32
    %c128_i32 = arith.constant 128 : i32
    %23 = arith.muli %22, %c128_i32 : i32
    %24 = tpu.iota {dimensions = array<i32: 1>} : vector<1x128xi32>
    %25 = vector.broadcast %23 : i32 to vector<1x128xi32>
    %26 = arith.addi %25, %24 : vector<1x128xi32>
    %27 = vector.broadcast %4 : i32 to vector<1x128xi32>
    %28 = arith.cmpi slt, %26, %27 : vector<1x128xi32>
    %29 = arith.addf %15, %18 : vector<1x128xf32>
    %30 = vector.broadcast %3 : f32 to vector<1x128xf32>
    %31 = arith.addf %29, %30 : vector<1x128xf32>
    %cst_13 = arith.constant 0.000000e+00 : f32
    %32 = vector.broadcast %cst_13 : f32 to vector<1x128xf32>
    %33 = arith.cmpf oge, %31, %32 : vector<1x128xf32>
    %cst_14 = arith.constant 3.000000e-01 : f32
    %34 = vector.broadcast %cst_14 : f32 to vector<1x128xf32>
    %35 = arith.mulf %34, %31 : vector<1x128xf32>
    %36 = arith.select %33, %31, %35 : vector<1x128xi1>, vector<1x128xf32>
    %37 = arith.addf %15, %20 : vector<1x128xf32>
    %38 = vector.broadcast %3 : f32 to vector<1x128xf32>
    %39 = arith.addf %37, %38 : vector<1x128xf32>
    %cst_15 = arith.constant 0.000000e+00 : f32
    %40 = vector.broadcast %cst_15 : f32 to vector<1x128xf32>
    %41 = arith.cmpf oge, %39, %40 : vector<1x128xf32>
    %cst_16 = arith.constant 3.000000e-01 : f32
    %42 = vector.broadcast %cst_16 : f32 to vector<1x128xf32>
    %43 = arith.mulf %42, %39 : vector<1x128xf32>
    %44 = arith.select %41, %39, %43 : vector<1x128xi1>, vector<1x128xf32>
    %45 = arith.addf %36, %44 : vector<1x128xf32>
    %cst_17 = arith.constant 0.000000e+00 : f32
    %46 = vector.broadcast %cst_17 : f32 to vector<1x128xf32>
    %47 = arith.select %28, %45, %46 : vector<1x128xi1>, vector<1x128xf32>
    %cst_18 = arith.constant dense<0.000000e+00> : vector<1xf32>
    %48 = vector.multi_reduction <add>, %47, %cst_18 [1] : vector<1x128xf32> to vector<1xf32>
    %49 = vector.shape_cast %48 : vector<1xf32> to vector<1x1xf32>
    %50 = arith.addf %17, %16 : vector<1x128xf32>
    %51 = vector.broadcast %3 : f32 to vector<1x128xf32>
    %52 = arith.addf %50, %51 : vector<1x128xf32>
    %cst_19 = arith.constant 0.000000e+00 : f32
    %53 = vector.broadcast %cst_19 : f32 to vector<1x128xf32>
    %54 = arith.cmpf oge, %52, %53 : vector<1x128xf32>
    %cst_20 = arith.constant 3.000000e-01 : f32
    %55 = vector.broadcast %cst_20 : f32 to vector<1x128xf32>
    %56 = arith.mulf %55, %52 : vector<1x128xf32>
    %57 = arith.select %54, %52, %56 : vector<1x128xi1>, vector<1x128xf32>
    %58 = arith.addf %17, %20 : vector<1x128xf32>
    %59 = vector.broadcast %3 : f32 to vector<1x128xf32>
    %60 = arith.addf %58, %59 : vector<1x128xf32>
    %cst_21 = arith.constant 0.000000e+00 : f32
    %61 = vector.broadcast %cst_21 : f32 to vector<1x128xf32>
    %62 = arith.cmpf oge, %60, %61 : vector<1x128xf32>
    %cst_22 = arith.constant 3.000000e-01 : f32
    %63 = vector.broadcast %cst_22 : f32 to vector<1x128xf32>
    %64 = arith.mulf %63, %60 : vector<1x128xf32>
    %65 = arith.select %62, %60, %64 : vector<1x128xi1>, vector<1x128xf32>
    %66 = arith.addf %57, %65 : vector<1x128xf32>
    %cst_23 = arith.constant 0.000000e+00 : f32
    %67 = vector.broadcast %cst_23 : f32 to vector<1x128xf32>
    %68 = arith.select %28, %66, %67 : vector<1x128xi1>, vector<1x128xf32>
    %cst_24 = arith.constant dense<0.000000e+00> : vector<1xf32>
    %69 = vector.multi_reduction <add>, %68, %cst_24 [1] : vector<1x128xf32> to vector<1xf32>
    %70 = vector.shape_cast %69 : vector<1xf32> to vector<1x1xf32>
    %71 = arith.addf %19, %16 : vector<1x128xf32>
    %72 = vector.broadcast %3 : f32 to vector<1x128xf32>
    %73 = arith.addf %71, %72 : vector<1x128xf32>
    %cst_25 = arith.constant 0.000000e+00 : f32
    %74 = vector.broadcast %cst_25 : f32 to vector<1x128xf32>
    %75 = arith.cmpf oge, %73, %74 : vector<1x128xf32>
    %cst_26 = arith.constant 3.000000e-01 : f32
    %76 = vector.broadcast %cst_26 : f32 to vector<1x128xf32>
    %77 = arith.mulf %76, %73 : vector<1x128xf32>
    %78 = arith.select %75, %73, %77 : vector<1x128xi1>, vector<1x128xf32>
    %79 = arith.addf %19, %18 : vector<1x128xf32>
    %80 = vector.broadcast %3 : f32 to vector<1x128xf32>
    %81 = arith.addf %79, %80 : vector<1x128xf32>
    %cst_27 = arith.constant 0.000000e+00 : f32
    %82 = vector.broadcast %cst_27 : f32 to vector<1x128xf32>
    %83 = arith.cmpf oge, %81, %82 : vector<1x128xf32>
    %cst_28 = arith.constant 3.000000e-01 : f32
    %84 = vector.broadcast %cst_28 : f32 to vector<1x128xf32>
    %85 = arith.mulf %84, %81 : vector<1x128xf32>
    %86 = arith.select %83, %81, %85 : vector<1x128xi1>, vector<1x128xf32>
    %87 = arith.addf %78, %86 : vector<1x128xf32>
    %cst_29 = arith.constant 0.000000e+00 : f32
    %88 = vector.broadcast %cst_29 : f32 to vector<1x128xf32>
    %89 = arith.select %28, %87, %88 : vector<1x128xi1>, vector<1x128xf32>
    %cst_30 = arith.constant dense<0.000000e+00> : vector<1xf32>
    %90 = vector.multi_reduction <add>, %89, %cst_30 [1] : vector<1x128xf32> to vector<1xf32>
    %91 = vector.shape_cast %90 : vector<1xf32> to vector<1x1xf32>
    %92 = tpu.iota {dimensions = array<i32: 1>} : vector<1x128xi32>
    %c0_i32_31 = arith.constant 0 : i32
    %93 = vector.broadcast %c0_i32_31 : i32 to vector<1x128xi32>
    %94 = arith.cmpi eq, %92, %93 : vector<1x128xi32>
    %c1_i32_32 = arith.constant 1 : i32
    %95 = vector.broadcast %c1_i32_32 : i32 to vector<1x128xi32>
    %96 = arith.cmpi eq, %92, %95 : vector<1x128xi32>
    %c2_i32 = arith.constant 2 : i32
    %97 = vector.broadcast %c2_i32 : i32 to vector<1x128xi32>
    %98 = arith.cmpi eq, %92, %97 : vector<1x128xi32>
    %cst_33 = arith.constant 0.000000e+00 : f32
    %99 = vector.shape_cast %91 : vector<1x1xf32> to vector<1x1xf32>
    %100 = vector.broadcast %99 : vector<1x1xf32> to vector<1x128xf32>
    %101 = vector.broadcast %cst_33 : f32 to vector<1x128xf32>
    %102 = arith.select %98, %100, %101 : vector<1x128xi1>, vector<1x128xf32>
    %103 = vector.shape_cast %70 : vector<1x1xf32> to vector<1x1xf32>
    %104 = vector.broadcast %103 : vector<1x1xf32> to vector<1x128xf32>
    %105 = arith.select %96, %104, %102 : vector<1x128xi1>, vector<1x128xf32>
    %106 = vector.shape_cast %49 : vector<1x1xf32> to vector<1x1xf32>
    %107 = vector.broadcast %106 : vector<1x1xf32> to vector<1x128xf32>
    %108 = arith.select %94, %107, %105 : vector<1x128xi1>, vector<1x128xf32>
    %c0_34 = arith.constant 0 : index
    %c0_35 = arith.constant 0 : index
    %109 = vector.load %arg6[%c0_34, %c0_35] : memref<8x128xf32, #tpu.memory_space<vmem>>, vector<8x128xf32>
    %110 = vector.shape_cast %108 : vector<1x128xf32> to vector<1x128xf32>
    %111 = vector.broadcast %110 : vector<1x128xf32> to vector<8x128xf32>
    %112 = arith.addf %109, %111 : vector<8x128xf32>
    %c0_36 = arith.constant 0 : index
    %c0_37 = arith.constant 0 : index
    %113 = vector.load %arg6[%c0_36, %c0_37] : memref<8x128xf32, #tpu.memory_space<vmem>>, vector<8x128xf32>
    tpu.vector_store %arg6[%c0_36, %c0_37], %112 {strides = array<i32>} : memref<8x128xf32, #tpu.memory_space<vmem>>, vector<8x128xf32>,
    return
  }
  func.func @transform_0(%arg0: i32, %arg1: i32) -> i32 {
    %c0_i32 = arith.constant 0 : i32
    %c0_i32_0 = arith.constant 0 : i32
    return %c0_i32 : i32
  }
  func.func @transform_1(%arg0: i32, %arg1: i32) -> i32 {
    %c0_i32 = arith.constant 0 : i32
    %c0_i32_0 = arith.constant 0 : i32
    return %c0_i32 : i32
  }
  func.func @transform_2(%arg0: i32, %arg1: i32) -> (i32, i32) {
    %c0_i32 = arith.constant 0 : i32
    %c0_i32_0 = arith.constant 0 : i32
    %c0_i32_1 = arith.constant 0 : i32
    return %c0_i32, %c0_i32_0 : i32, i32
  }
  func.func @transform_3(%arg0: i32, %arg1: i32) -> (i32, i32, i32) {
    %c1_i32 = arith.constant 1 : i32
    %0 = arith.muli %arg0, %c1_i32 : i32
    %1 = arith.addi %0, %arg1 : i32
    %c0_i32 = arith.constant 0 : i32
    %c0_i32_0 = arith.constant 0 : i32
    %c0_i32_1 = arith.constant 0 : i32
    return %c0_i32, %1, %c0_i32_0 : i32, i32, i32
  }
  func.func @transform_4(%arg0: i32, %arg1: i32) -> (i32, i32) {
    %c0_i32 = arith.constant 0 : i32
    %c0_i32_0 = arith.constant 0 : i32
    return %arg0, %c0_i32 : i32, i32
  }
}

</mosaic_0001>

<llo_original>
// kernel: tpu_custom_call.1
$region0: #{tpu_custom_call.1}
  #allocation0 [shape = 'u32[]', space=smem, size = 0x4, offset = 0x4, fixed_abs, tag = 'smem constant byte address 0x4 - core index']
  #allocation1 [shape = 'u32[144,128]{1,0:T(1,128)}', space=vmem, size = 0x12000, scoped, tag = 'internal scratch']
  #allocation2 [shape = 's32[1]{0:T(128)S(6)}', space=smem, size = 0x200, scoped, tag = 'scoped memory for tpu_custom_call.1']
  #allocation3 [shape = 'f32[1]{0:T(128)S(6)}', space=smem, size = 0x200, scoped, tag = 'scoped memory for tpu_custom_call.1']
  %s0 = inlined_call_operand.<no memory space> [shape: s32[1], index: 0, kind: input, shape index: {}]
  %s1 = inlined_call_operand.<no memory space> [shape: f32[1], index: 1, kind: input, shape index: {}]
  %s2 = inlined_call_operand.vmem [shape: f32[2,32], index: 2, kind: input, shape index: {}]
  %s3 = inlined_call_operand.vmem [shape: f32[3,128,32], index: 3, kind: input, shape index: {}]
  %s4 = inlined_call_operand.hbm [shape: f32[8,128], index: 4, kind: output, shape index: {}]
  %s5 = sld [smem:[#allocation0]]
  $region30: #{tpu_custom_call.1} parent=0
    _
  %s7 = ssub.s32 1, %s5
  %s8 = scalar_select 0, %s7, %s5
  %9 = sst [smem:[#allocation2]] %s0
  %10 = sst [smem:[#allocation3]] %s1
  $region1: #{tpu_custom_call.1} parent=0
    #allocation4 [shape = 'u8[4096]{0}', space=vmem, size = 0x1000, scoped, tag = 'output window, operand 0, single buffered']
    #allocation5 [shape = 's32[1]{0}', space=sflag, size = 0x4, scoped, tag = 'scoped memory for tpu_custom_call.1']
    %11 = vsyncpa [#allocation5], 0
    // Predicated region
    $region2: #{tpu_custom_call.1} parent=1 // pred_check
      _
    $region3: #{tpu_custom_call.1} parent=1 // pred_check_branch
      %13 = sbr.rel (0) target = $region5
    $region4: #{tpu_custom_call.1} parent=1 // pred_region
      _
    $region5: #{tpu_custom_call.1} parent=1 // pred_fallthru
      _
    // Predicated region
    $region6: #{tpu_custom_call.1} parent=1 // pred_check
      _
    $region7: #{tpu_custom_call.1} parent=1 // pred_check_branch
      %15 = sbr.rel (0) target = $region9
    $region8: #{tpu_custom_call.1} parent=1 // pred_region
      _
    $region9: #{tpu_custom_call.1} parent=1 // pred_fallthru
      _
    // Predicated region
    $region10: #{tpu_custom_call.1} parent=1 // pred_check
      _
    $region11: #{tpu_custom_call.1} parent=1 // pred_check_branch
      %17 = sbr.rel (0) target = $region13
    $region12: #{tpu_custom_call.1} parent=1 // pred_region
      _
    $region13: #{tpu_custom_call.1} parent=1 // pred_fallthru
      _
    // Predicated region
    $region14: #{tpu_custom_call.1} parent=1 // pred_check
      _
    $region15: #{tpu_custom_call.1} parent=1 // pred_check_branch
      %19 = sbr.rel (0) target = $region17
    $region16: #{tpu_custom_call.1} parent=1 // pred_region
      %s20 = sadd.s32 0, 0
      %s21 = smul.u32 16, %s20
      %p22 = scmp.lt.s32.totalorder %s21, 15
      %s23 = scalar_select %p22, %s21, 15
      %s24 = smul.addr %s23, 8
      %s25 = scalar_lea.vmem %s3, %s24
      %s26 = sadd.s32 0, 0
      %s27 = smul.u32 16, %s26
    $region17: #{tpu_custom_call.1} parent=1 // pred_fallthru
      _
    %s28 = sadd.s32 0, 0
    %s29 = smul.u32 16, %s28
    %p30 = scmp.lt.s32.totalorder %s29, 15
    %s31 = scalar_select %p30, %s29, 15
    %s32 = smul.addr %s31, 8
    %s33 = scalar_lea.vmem %s3, %s32
    %s34 = sadd.s32 0, 0
    %s35 = smul.u32 16, %s34
    %p36 = scmp.lt.s32.totalorder %s35, 15
    %s37 = scalar_select %p36, %s35, 15
    %s38 = smul.addr %s37, 8
    %s39 = scalar_lea.vmem %s3, %s38
    %s40 = sadd.s32 0, 0
    %s41 = smul.u32 16, %s40
    %p42 = scmp.eq.s32.totalorder 0, 0
    // Predicated region
    $region18: #{tpu_custom_call.1} parent=1 // pred_check
      %p43 = pneg %p42
    $region19: #{tpu_custom_call.1} parent=1 // pred_check_branch
      %45 = sbr.rel (%p43) target = $region21
    $region20: #{tpu_custom_call.1} parent=1 // pred_region
      %46 = vst [vmem:[#allocation4] sm:$0xff] 0.0
    $region21: #{tpu_custom_call.1} parent=1 // pred_fallthru
      _
    %s47 = sld [smem:[#allocation3]]
    %s48 = sld [smem:[#allocation2]]
    %v49 = vld [vmem:[%s2] sm:$0x3]
    %v50 = vld [vmem:[%s39] sm:$0xff]
    %v51 = vld [vmem:[%s39 + $0x8] sm:$0xff]
    %v52 = vld [vmem:[%s39 + $0x10] sm:$0xff]
    %v53 = vld [vmem:[%s39 + $0x18] sm:$0xff]
    %v54 = vld [vmem:[%s39 + $0x20] sm:$0xff]
    %v55 = vld [vmem:[%s39 + $0x28] sm:$0xff]
    %v56 = vld [vmem:[%s39 + $0x30] sm:$0xff]
    %v57 = vld [vmem:[%s39 + $0x38] sm:$0xff]
    %v58 = vld [vmem:[%s39 + $0x40] sm:$0xff]
    %v59 = vld [vmem:[%s39 + $0x48] sm:$0xff]
    %v60 = vld [vmem:[%s39 + $0x50] sm:$0xff]
    %v61 = vld [vmem:[%s39 + $0x58] sm:$0xff]
    %v62 = vld [vmem:[%s39 + $0x60] sm:$0xff]
    %v63 = vld [vmem:[%s39 + $0x68] sm:$0xff]
    %v64 = vld [vmem:[%s39 + $0x70] sm:$0xff]
    %v65 = vld [vmem:[%s39 + $0x78] sm:$0xff]
    %vm66 = vcmask 261120
    %v68 = vsel %vm66, %v49, 0
    %v71 = vsel %vm66, %v50, 0
    %v74 = vsel %vm66, %v51, 0
    %v77 = vsel %vm66, %v52, 0
    %v80 = vsel %vm66, %v53, 0
    %v83 = vsel %vm66, %v54, 0
    %v86 = vsel %vm66, %v55, 0
    %v89 = vsel %vm66, %v56, 0
    %v92 = vsel %vm66, %v57, 0
    %v95 = vsel %vm66, %v58, 0
    %v98 = vsel %vm66, %v59, 0
    %v101 = vsel %vm66, %v60, 0
    %v104 = vsel %vm66, %v61, 0
    %v107 = vsel %vm66, %v62, 0
    %v110 = vsel %vm66, %v63, 0
    %v113 = vsel %vm66, %v64, 0
    %v116 = vsel %vm66, %v65, 0
    %118 = vmatprep.subr.mxu0 0.0
    %119 = vmatpush1.xpose.msra.mxu0 %v71
    %120 = vmatprep.subr.mxu0 0.0
    %121 = vmatpush1.xpose.msra.mxu0 %v74
    %122 = vmatprep.subr.mxu0 0.0
    %123 = vmatpush1.xpose.msra.mxu0 %v77
    %124 = vmatprep.subr.mxu0 0.0
    %125 = vmatpush1.xpose.msra.mxu0 %v80
    %126 = vmatprep.subr.mxu0 0.0
    %127 = vmatpush1.xpose.msra.mxu0 %v83
    %128 = vmatprep.subr.mxu0 0.0
    %129 = vmatpush1.xpose.msra.mxu0 %v86
    %130 = vmatprep.subr.mxu0 0.0
    %131 = vmatpush1.xpose.msra.mxu0 %v89
    %132 = vmatprep.subr.mxu0 0.0
    %133 = vmatpush1.xpose.msra.mxu0 %v92
    %134 = vmatprep.subr.mxu0 0.0
    %135 = vmatpush1.xpose.msra.mxu0 %v95
    %136 = vmatprep.subr.mxu0 0.0
    %137 = vmatpush1.xpose.msra.mxu0 %v98
    %138 = vmatprep.subr.mxu0 0.0
    %139 = vmatpush1.xpose.msra.mxu0 %v101
    %140 = vmatprep.subr.mxu0 0.0
    %141 = vmatpush1.xpose.msra.mxu0 %v104
    %142 = vmatprep.subr.mxu0 0.0
    %143 = vmatpush1.xpose.msra.mxu0 %v107
    %144 = vmatprep.subr.mxu0 0.0
    %145 = vmatpush1.xpose.msra.mxu0 %v110
    %146 = vmatprep.subr.mxu0 0.0
    %147 = vmatpush1.xpose.msra.mxu0 %v113
    %148 = vmatprep.subr.mxu0 0.0
    %149 = vmatpush1.xpose.msra.mxu0 %v116
    %150 = vmatprep.subr.mxu0 0.0
    %151 = vmatpush1.xpose.msra.mxu0 0.0
    %152 = vmatprep.subr.mxu0 0.0
    %153 = vmatpush1.xpose.msra.mxu0 0.0
    %154 = vmatprep.subr.mxu0 0.0
    %155 = vmatpush1.xpose.msra.mxu0 0.0
    %156 = vmatprep.subr.mxu0 0.0
    %157 = vmatpush1.xpose.msra.mxu0 0.0
    %158 = vmatprep.subr.mxu0 0.0
    %159 = vmatpush1.xpose.msra.mxu0 0.0
    %160 = vmatprep.subr.mxu0 0.0
    %161 = vmatpush1.xpose.msra.mxu0 0.0
    %162 = vmatprep.subr.mxu0 0.0
    %163 = vmatpush1.xpose.msra.mxu0 0.0
    %164 = vmatprep.subr.mxu0 0.0
    %165 = vmatpush1.xpose.msra.mxu0 0.0
    %166 = vmatprep.subr.mxu0 0.0
    %167 = vmatpush1.xpose.msra.mxu0 0.0
    %168 = vmatprep.subr.mxu0 0.0
    %169 = vmatpush1.xpose.msra.mxu0 0.0
    %170 = vmatprep.subr.mxu0 0.0
    %171 = vmatpush1.xpose.msra.mxu0 0.0
    %172 = vmatprep.subr.mxu0 0.0
    %173 = vmatpush1.xpose.msra.mxu0 0.0
    %174 = vmatprep.subr.mxu0 0.0
    %175 = vmatpush1.xpose.msra.mxu0 0.0
    %176 = vmatprep.subr.mxu0 0.0
    %177 = vmatpush1.xpose.msra.mxu0 0.0
    %178 = vmatprep.subr.mxu0 0.0
    %179 = vmatpush1.xpose.msra.mxu0 0.0
    %180 = vmatprep.subr.mxu0 0.0
    %181 = vmatpush1.xpose.msra.mxu0 0.0
    %182 = vmatprep.mubr.f32.mxu0 0.0
    %183 = vmatmul.mubr.f32.gmra.mrb[0].mxu0 %v68
    %v184 = vpop.f32.mrb[0].mxu0
    %v185 = vadd.f32 0.0, %v184
    %v186 = vpop.f32.mrb[0].mxu0
    %187 = vdwg.mxu0
    %s188 = scalar_lea.vmem %s39, 128
    %v189 = vld [vmem:[%s188] sm:$0xff]
    %v190 = vld [vmem:[%s188 + $0x8] sm:$0xff]
    %v191 = vld [vmem:[%s188 + $0x10] sm:$0xff]
    %v192 = vld [vmem:[%s188 + $0x18] sm:$0xff]
    %v193 = vld [vmem:[%s188 + $0x20] sm:$0xff]
    %v194 = vld [vmem:[%s188 + $0x28] sm:$0xff]
    %v195 = vld [vmem:[%s188 + $0x30] sm:$0xff]
    %v196 = vld [vmem:[%s188 + $0x38] sm:$0xff]
    %v197 = vld [vmem:[%s188 + $0x40] sm:$0xff]
    %v198 = vld [vmem:[%s188 + $0x48] sm:$0xff]
    %v199 = vld [vmem:[%s188 + $0x50] sm:$0xff]
    %v200 = vld [vmem:[%s188 + $0x58] sm:$0xff]
    %v201 = vld [vmem:[%s188 + $0x60] sm:$0xff]
    %v202 = vld [vmem:[%s188 + $0x68] sm:$0xff]
    %v203 = vld [vmem:[%s188 + $0x70] sm:$0xff]
    %v204 = vld [vmem:[%s188 + $0x78] sm:$0xff]
    %v206 = vsel %vm66, %v189, 0
    %v209 = vsel %vm66, %v190, 0
    %v212 = vsel %vm66, %v191, 0
    %v215 = vsel %vm66, %v192, 0
    %v218 = vsel %vm66, %v193, 0
    %v221 = vsel %vm66, %v194, 0
    %v224 = vsel %vm66, %v195, 0
    %v227 = vsel %vm66, %v196, 0
    %v230 = vsel %vm66, %v197, 0
    %v233 = vsel %vm66, %v198, 0
    %v236 = vsel %vm66, %v199, 0
    %v239 = vsel %vm66, %v200, 0
    %v242 = vsel %vm66, %v201, 0
    %v245 = vsel %vm66, %v202, 0
    %v248 = vsel %vm66, %v203, 0
    %v251 = vsel %vm66, %v204, 0
    %253 = vmatprep.subr.mxu0 0.0
    %254 = vmatpush1.xpose.msra.mxu0 %v206
    %255 = vmatprep.subr.mxu0 0.0
    %256 = vmatpush1.xpose.msra.mxu0 %v209
    %257 = vmatprep.subr.mxu0 0.0
    %258 = vmatpush1.xpose.msra.mxu0 %v212
    %259 = vmatprep.subr.mxu0 0.0
    %260 = vmatpush1.xpose.msra.mxu0 %v215
    %261 = vmatprep.subr.mxu0 0.0
    %262 = vmatpush1.xpose.msra.mxu0 %v218
    %263 = vmatprep.subr.mxu0 0.0
    %264 = vmatpush1.xpose.msra.mxu0 %v221
    %265 = vmatprep.subr.mxu0 0.0
    %266 = vmatpush1.xpose.msra.mxu0 %v224
    %267 = vmatprep.subr.mxu0 0.0
    %268 = vmatpush1.xpose.msra.mxu0 %v227
    %269 = vmatprep.subr.mxu0 0.0
    %270 = vmatpush1.xpose.msra.mxu0 %v230
    %271 = vmatprep.subr.mxu0 0.0
    %272 = vmatpush1.xpose.msra.mxu0 %v233
    %273 = vmatprep.subr.mxu0 0.0
    %274 = vmatpush1.xpose.msra.mxu0 %v236
    %275 = vmatprep.subr.mxu0 0.0
    %276 = vmatpush1.xpose.msra.mxu0 %v239
    %277 = vmatprep.subr.mxu0 0.0
    %278 = vmatpush1.xpose.msra.mxu0 %v242
    %279 = vmatprep.subr.mxu0 0.0
    %280 = vmatpush1.xpose.msra.mxu0 %v245
    %281 = vmatprep.subr.mxu0 0.0
    %282 = vmatpush1.xpose.msra.mxu0 %v248
    %283 = vmatprep.subr.mxu0 0.0
    %284 = vmatpush1.xpose.msra.mxu0 %v251
    %285 = vmatprep.subr.mxu0 0.0
    %286 = vmatpush1.xpose.msra.mxu0 0.0
    %287 = vmatprep.subr.mxu0 0.0
    %288 = vmatpush1.xpose.msra.mxu0 0.0
    %289 = vmatprep.subr.mxu0 0.0
    %290 = vmatpush1.xpose.msra.mxu0 0.0
    %291 = vmatprep.subr.mxu0 0.0
    %292 = vmatpush1.xpose.msra.mxu0 0.0
    %293 = vmatprep.subr.mxu0 0.0
    %294 = vmatpush1.xpose.msra.mxu0 0.0
    %295 = vmatprep.subr.mxu0 0.0
    %296 = vmatpush1.xpose.msra.mxu0 0.0
    %297 = vmatprep.subr.mxu0 0.0
    %298 = vmatpush1.xpose.msra.mxu0 0.0
    %299 = vmatprep.subr.mxu0 0.0
    %300 = vmatpush1.xpose.msra.mxu0 0.0
    %301 = vmatprep.subr.mxu0 0.0
    %302 = vmatpush1.xpose.msra.mxu0 0.0
    %303 = vmatprep.subr.mxu0 0.0
    %304 = vmatpush1.xpose.msra.mxu0 0.0
    %305 = vmatprep.subr.mxu0 0.0
    %306 = vmatpush1.xpose.msra.mxu0 0.0
    %307 = vmatprep.subr.mxu0 0.0
    %308 = vmatpush1.xpose.msra.mxu0 0.0
    %309 = vmatprep.subr.mxu0 0.0
    %310 = vmatpush1.xpose.msra.mxu0 0.0
    %311 = vmatprep.subr.mxu0 0.0
    %312 = vmatpush1.xpose.msra.mxu0 0.0
    %313 = vmatprep.subr.mxu0 0.0
    %314 = vmatpush1.xpose.msra.mxu0 0.0
    %315 = vmatprep.subr.mxu0 0.0
    %316 = vmatpush1.xpose.msra.mxu0 0.0
    %317 = vmatprep.mubr.f32.mxu0 0.0
    %318 = vmatmul.mubr.f32.gmra.mrb[0].mxu0 %v68
    %v319 = vpop.f32.mrb[0].mxu0
    %v320 = vadd.f32 0.0, %v319
    %v321 = vpop.f32.mrb[0].mxu0
    %322 = vdwg.mxu0
    %s323 = scalar_lea.vmem %s39, 256
    %v324 = vld [vmem:[%s323] sm:$0xff]
    %v325 = vld [vmem:[%s323 + $0x8] sm:$0xff]
    %v326 = vld [vmem:[%s323 + $0x10] sm:$0xff]
    %v327 = vld [vmem:[%s323 + $0x18] sm:$0xff]
    %v328 = vld [vmem:[%s323 + $0x20] sm:$0xff]
    %v329 = vld [vmem:[%s323 + $0x28] sm:$0xff]
    %v330 = vld [vmem:[%s323 + $0x30] sm:$0xff]
    %v331 = vld [vmem:[%s323 + $0x38] sm:$0xff]
    %v332 = vld [vmem:[%s323 + $0x40] sm:$0xff]
    %v333 = vld [vmem:[%s323 + $0x48] sm:$0xff]
    %v334 = vld [vmem:[%s323 + $0x50] sm:$0xff]
    %v335 = vld [vmem:[%s323 + $0x58] sm:$0xff]
    %v336 = vld [vmem:[%s323 + $0x60] sm:$0xff]
    %v337 = vld [vmem:[%s323 + $0x68] sm:$0xff]
    %v338 = vld [vmem:[%s323 + $0x70] sm:$0xff]
    %v339 = vld [vmem:[%s323 + $0x78] sm:$0xff]
    %v341 = vsel %vm66, %v324, 0
    %v344 = vsel %vm66, %v325, 0
    %v347 = vsel %vm66, %v326, 0
    %v350 = vsel %vm66, %v327, 0
    %v353 = vsel %vm66, %v328, 0
    %v356 = vsel %vm66, %v329, 0
    %v359 = vsel %vm66, %v330, 0
    %v362 = vsel %vm66, %v331, 0
    %v365 = vsel %vm66, %v332, 0
    %v368 = vsel %vm66, %v333, 0
    %v371 = vsel %vm66, %v334, 0
    %v374 = vsel %vm66, %v335, 0
    %v377 = vsel %vm66, %v336, 0
    %v380 = vsel %vm66, %v337, 0
    %v383 = vsel %vm66, %v338, 0
    %v386 = vsel %vm66, %v339, 0
    %388 = vmatprep.subr.mxu0 0.0
    %389 = vmatpush1.xpose.msra.mxu0 %v341
    %390 = vmatprep.subr.mxu0 0.0
    %391 = vmatpush1.xpose.msra.mxu0 %v344
    %392 = vmatprep.subr.mxu0 0.0
    %393 = vmatpush1.xpose.msra.mxu0 %v347
    %394 = vmatprep.subr.mxu0 0.0
    %395 = vmatpush1.xpose.msra.mxu0 %v350
    %396 = vmatprep.subr.mxu0 0.0
    %397 = vmatpush1.xpose.msra.mxu0 %v353
    %398 = vmatprep.subr.mxu0 0.0
    %399 = vmatpush1.xpose.msra.mxu0 %v356
    %400 = vmatprep.subr.mxu0 0.0
    %401 = vmatpush1.xpose.msra.mxu0 %v359
    %402 = vmatprep.subr.mxu0 0.0
    %403 = vmatpush1.xpose.msra.mxu0 %v362
    %404 = vmatprep.subr.mxu0 0.0
    %405 = vmatpush1.xpose.msra.mxu0 %v365
    %406 = vmatprep.subr.mxu0 0.0
    %407 = vmatpush1.xpose.msra.mxu0 %v368
    %408 = vmatprep.subr.mxu0 0.0
    %409 = vmatpush1.xpose.msra.mxu0 %v371
    %410 = vmatprep.subr.mxu0 0.0
    %411 = vmatpush1.xpose.msra.mxu0 %v374
    %412 = vmatprep.subr.mxu0 0.0
    %413 = vmatpush1.xpose.msra.mxu0 %v377
    %414 = vmatprep.subr.mxu0 0.0
    %415 = vmatpush1.xpose.msra.mxu0 %v380
    %416 = vmatprep.subr.mxu0 0.0
    %417 = vmatpush1.xpose.msra.mxu0 %v383
    %418 = vmatprep.subr.mxu0 0.0
    %419 = vmatpush1.xpose.msra.mxu0 %v386
    %420 = vmatprep.subr.mxu0 0.0
    %421 = vmatpush1.xpose.msra.mxu0 0.0
    %422 = vmatprep.subr.mxu0 0.0
    %423 = vmatpush1.xpose.msra.mxu0 0.0
    %424 = vmatprep.subr.mxu0 0.0
    %425 = vmatpush1.xpose.msra.mxu0 0.0
    %426 = vmatprep.subr.mxu0 0.0
    %427 = vmatpush1.xpose.msra.mxu0 0.0
    %428 = vmatprep.subr.mxu0 0.0
    %429 = vmatpush1.xpose.msra.mxu0 0.0
    %430 = vmatprep.subr.mxu0 0.0
    %431 = vmatpush1.xpose.msra.mxu0 0.0
    %432 = vmatprep.subr.mxu0 0.0
    %433 = vmatpush1.xpose.msra.mxu0 0.0
    %434 = vmatprep.subr.mxu0 0.0
    %435 = vmatpush1.xpose.msra.mxu0 0.0
    %436 = vmatprep.subr.mxu0 0.0
    %437 = vmatpush1.xpose.msra.mxu0 0.0
    %438 = vmatprep.subr.mxu0 0.0
    %439 = vmatpush1.xpose.msra.mxu0 0.0
    %440 = vmatprep.subr.mxu0 0.0
    %441 = vmatpush1.xpose.msra.mxu0 0.0
    %442 = vmatprep.subr.mxu0 0.0
    %443 = vmatpush1.xpose.msra.mxu0 0.0
    %444 = vmatprep.subr.mxu0 0.0
    %445 = vmatpush1.xpose.msra.mxu0 0.0
    %446 = vmatprep.subr.mxu0 0.0
    %447 = vmatpush1.xpose.msra.mxu0 0.0
    %448 = vmatprep.subr.mxu0 0.0
    %449 = vmatpush1.xpose.msra.mxu0 0.0
    %450 = vmatprep.subr.mxu0 0.0
    %451 = vmatpush1.xpose.msra.mxu0 0.0
    %452 = vmatprep.mubr.f32.mxu0 0.0
    %453 = vmatmul.mubr.f32.gmra.mrb[0].mxu0 %v68
    %v454 = vpop.f32.mrb[0].mxu0
    %v455 = vadd.f32 0.0, %v454
    %v456 = vpop.f32.mrb[0].mxu0
    %457 = vdwg.mxu0
    %s458 = sadd.s32 0, 0
    %s459 = smul.u32 %s458, 128
    %v460 = vlaneseq
    %v461 = vand.u32 %v460, 127
    %v462 = vstv %s459
    %v463 = vadd.s32 %v462, %v461
    %v464 = vstv %s48
    %vm465 = vcmp.lt.s32.totalorder %v463, %v464
    %v467 = vrot.slane %v320, 1
    %v469 = vadd.f32 %v185, %v467
    %v470 = vstv %s47
    %v471 = vadd.f32 %v469, %v470
    %vm472 = vcmp.ge.f32.partialorder %v471, 0.0
    %v473 = vmul.f32 %v471, 0.3
    %v474 = vsel %vm472, %v471, %v473
    %v476 = vrot.slane %v455, 1
    %v478 = vadd.f32 %v185, %v476
    %v479 = vadd.f32 %v478, %v470
    %vm480 = vcmp.ge.f32.partialorder %v479, 0.0
    %v481 = vmul.f32 %v479, 0.3
    %v482 = vsel %vm480, %v479, %v481
    %v483 = vadd.f32 %v474, %v482
    %v484 = vsel %vm465, %v483, 0.0
    %vm485 = vcmask 1040384
    %v486 = vsel %vm485, %v484, 0.0
    %487 = vadd.xlane.f32.xlu0 %v486
    %v488 = vpop.xlane.xlu0 %487
    %v490 = vrot.slane %v185, 1
    %v492 = vadd.f32 %v320, %v490
    %v493 = vadd.f32 %v492, %v470
    %vm494 = vcmp.ge.f32.partialorder %v493, 0.0
    %v495 = vmul.f32 %v493, 0.3
    %v496 = vsel %vm494, %v493, %v495
    %v497 = vadd.f32 %v320, %v476
    %v498 = vadd.f32 %v497, %v470
    %vm499 = vcmp.ge.f32.partialorder %v498, 0.0
    %v500 = vmul.f32 %v498, 0.3
    %v501 = vsel %vm499, %v498, %v500
    %v502 = vadd.f32 %v496, %v501
    %v503 = vsel %vm465, %v502, 0.0
    %v504 = vsel %vm485, %v503, 0.0
    %505 = vadd.xlane.f32.xlu0 %v504
    %v506 = vpop.xlane.xlu0 %505
    %v507 = vadd.f32 %v455, %v490
    %v508 = vadd.f32 %v507, %v470
    %vm509 = vcmp.ge.f32.partialorder %v508, 0.0
    %v510 = vmul.f32 %v508, 0.3
    %v511 = vsel %vm509, %v508, %v510
    %v512 = vadd.f32 %v455, %v467
    %v513 = vadd.f32 %v512, %v470
    %vm514 = vcmp.ge.f32.partialorder %v513, 0.0
    %v515 = vmul.f32 %v513, 0.3
    %v516 = vsel %vm514, %v513, %v515
    %v517 = vadd.f32 %v511, %v516
    %v518 = vsel %vm465, %v517, 0.0
    %v519 = vsel %vm485, %v518, 0.0
    %520 = vadd.xlane.f32.xlu0 %v519
    %v521 = vpop.xlane.xlu0 %520
    %vm522 = vcmp.eq.s32.totalorder %v461, 0
    %vm523 = vcmp.eq.s32.totalorder %v461, 1
    %vm524 = vcmp.eq.s32.totalorder %v461, 2
    %v525 = vsel %vm524, %v521, 0.0
    %v526 = vsel %vm523, %v506, %v525
    %v527 = vsel %vm522, %v488, %v526
    %v528 = vld [vmem:[#allocation4] sm:$0xff]
    %v529 = vlaneseq
    %v530 = vshrl.u32 %v529, 7
    %v531 = vsub.s32 0, %v530
    %v532 = vrot.slane %v527, %v531
    %v533 = vadd.f32 %v528, %v532
    %534 = vst [vmem:[#allocation4] sm:$0xff] %v533
    // Predicated region
    $region22: #{tpu_custom_call.1} parent=1 // pred_check
      _
    $region23: #{tpu_custom_call.1} parent=1 // pred_check_branch
      %536 = sbr.rel (0) target = $region25
    $region24: #{tpu_custom_call.1} parent=1 // pred_region
      %s538 = ssub.s32 128, 128
      %539 = vsyncadd [#allocation5], %s538
      %s541 = sshll.u32 [#allocation4], 4
      %s542 = int_to_ptr.vmem [resolvable:$true] %s541
      %544 = dma.vmem_to_hbm [thread:$0]  %s542, 128, %s4, [#allocation5]
    $region25: #{tpu_custom_call.1} parent=1 // pred_fallthru
      _
    // Predicated region
    $region26: #{tpu_custom_call.1} parent=1 // pred_check
      _
    $region27: #{tpu_custom_call.1} parent=1 // pred_check_branch
      %546 = sbr.rel (0) target = $region29
    $region28: #{tpu_custom_call.1} parent=1 // pred_region
      %547 = dma.done [#allocation5], 128
    $region29: #{tpu_custom_call.1} parent=1 // pred_fallthru
      _
    %548 = vsyncpa [#allocation5], 1

</llo_original>
